<compile_context>
chip_gen: v7x
topology: tpu7x:2x2x1
jax: 0.10.0
libtpu: 0.0.40
codegen_flags: <defaults>
</compile_context>

<pallas_src>
import functools

import jax
import jax.numpy as jnp
from jax.experimental import pallas as pl
from jax.experimental.pallas import tpu as pltpu

W_CORNERS = 200.0   # nn.BCEWithLogitsLoss(weight=torch.tensor(200))
W_EDGES = 16.0      # nn.BCEWithLogitsLoss(weight=torch.tensor(16))


def _l1_bce_kernel(x_ref, y_ref, out_ref, *, valid_m, inv_bce_n, tile_m):
    # x_ref / y_ref: (N, C, tile_m) block in VMEM. out_ref: (1,1) scalar in SMEM.
    i = pl.program_id(0)

    x = x_ref[...].astype(jnp.float32)
    y = y_ref[...].astype(jnp.float32)
    shape = x.shape

    # Channel ids (axis 1) and global lane index (axis 2) for masking/weights.
    c_idx = jax.lax.broadcasted_iota(jnp.int32, shape, 1)
    lane = jax.lax.broadcasted_iota(jnp.int32, shape, 2) + i * tile_m
    valid = lane < valid_m

    # Numerically stable BCE-with-logits (PyTorch's softplus formulation).
    bce = jnp.maximum(x, 0.0) - x * y + jnp.log1p(jnp.exp(-jnp.abs(x)))
    l1 = jnp.abs(x - y)

    # Per-channel selection + weighting, fused into a single reduction.
    w_bce = jnp.where(c_idx == 0, W_CORNERS, W_EDGES) * inv_bce_n  # mean -> /(N*H*W)
    elem = jnp.where(c_idx < 2, w_bce * bce, l1)
    elem = jnp.where(valid, elem, 0.0)  # mask OOB lanes of the last tile
    tile_sum = jnp.sum(elem)

    @pl.when(i == 0)
    def _():
        out_ref[0, 0] = 0.0

    out_ref[0, 0] += tile_sum


def l1_bce(X, Y, *, tile_m=None, vmem_block_budget_bytes=2 * 1024 * 1024):
    """X, Y: (N, C, H, W) arrays (C >= 3, channels 0/1 are BCE logits/targets).

    Returns the scalar float32 loss matching the PyTorch L1_BCE module.
    """
    N, C, H, W = X.shape
    M = H * W
    x3 = X.reshape(N, C, M)   # free view; no transpose, no extra HBM pass
    y3 = Y.reshape(N, C, M)

    # Tile the lane (spatial) axis; keep each input block small enough that
    # 2 inputs x 2 pipeline buffers fit comfortably in scoped VMEM on all gens.
    if tile_m is None:
        bytes_per_lane = N * C * x3.dtype.itemsize
        lanes = max(128, (vmem_block_budget_bytes // bytes_per_lane) // 128 * 128)
        tile_m = int(min(M, lanes))
    if tile_m >= M:
        tile_m = M
    elif tile_m % 128 != 0:
        raise ValueError("tile_m must be a multiple of 128 when smaller than H*W")

    num_tiles = pl.cdiv(M, tile_m)

    kernel = functools.partial(
        _l1_bce_kernel,
        valid_m=M,
        inv_bce_n=1.0 / float(N * M),
        tile_m=tile_m,
    )

    elems = N * C * M
    cost = pl.CostEstimate(
        flops=8 * elems,
        transcendentals=2 * elems,
        bytes_accessed=2 * elems * x3.dtype.itemsize + 4,
    )

    out = pl.pallas_call(
        kernel,
        out_shape=jax.ShapeDtypeStruct((1, 1), jnp.float32),
        grid=(num_tiles,),
        in_specs=[
            pl.BlockSpec((N, C, tile_m), lambda i: (0, 0, i)),
            pl.BlockSpec((N, C, tile_m), lambda i: (0, 0, i)),
        ],
        out_specs=pl.BlockSpec(memory_space=pltpu.MemorySpace.SMEM),
        compiler_params=pltpu.CompilerParams(
            dimension_semantics=("arbitrary",),
        ),
        cost_estimate=cost,
    )(x3, y3)
    return out[0, 0]


def _reference(X, Y):
    X = X.astype(jnp.float32)
    Y = Y.astype(jnp.float32)

    def bce_mean(logits, targets):
        return jnp.mean(
            jnp.maximum(logits, 0.0)
            - logits * targets
            + jnp.log1p(jnp.exp(-jnp.abs(logits)))
        )

    corners = W_CORNERS * bce_mean(X[:, 0], Y[:, 0])
    edges = W_EDGES * bce_mean(X[:, 1], Y[:, 1])
    sr = jnp.sum(jnp.abs(X[:, 2:] - Y[:, 2:]))
    return corners + edges + sr


if __name__ == "__main__":
    key = jax.random.PRNGKey(0)

    # Case 1: nominal small shape; tile_m=128 exercises the multi-step grid.
    N, C, H, W = 2, 4, 16, 16
    kx, ky01, kyr, key = jax.random.split(key, 4)
    X = jax.random.normal(kx, (N, C, H, W), dtype=jnp.float32)
    y_bce = jax.random.uniform(ky01, (N, 2, H, W), dtype=jnp.float32)   # BCE targets in [0,1]
    y_rest = jax.random.normal(kyr, (N, C - 2, H, W), dtype=jnp.float32)
    Y = jnp.concatenate([y_bce, y_rest], axis=1)

    loss = jax.block_until_ready(l1_bce(X, Y, tile_m=128))
    ref = jax.block_until_ready(_reference(X, Y))
    assert jnp.allclose(loss, ref, rtol=1e-5, atol=1e-5), (loss, ref)

    # Case 2: ragged spatial size (H*W = 195) -> last tile partially OOB,
    # exercising the lane-mask path.
    N2, C2, H2, W2 = 2, 4, 15, 13
    kx2, ky2a, ky2b, key = jax.random.split(key, 4)
    X2 = jax.random.normal(kx2, (N2, C2, H2, W2), dtype=jnp.float32)
    Y2 = jnp.concatenate(
        [jax.random.uniform(ky2a, (N2, 2, H2, W2), dtype=jnp.float32),
         jax.random.normal(ky2b, (N2, C2 - 2, H2, W2), dtype=jnp.float32)],
        axis=1,
    )
    loss2 = jax.block_until_ready(l1_bce(X2, Y2, tile_m=128))
    ref2 = jax.block_until_ready(_reference(X2, Y2))
    assert jnp.allclose(loss2, ref2, rtol=1e-5, atol=1e-5), (loss2, ref2)

    print("KERNEL_OK")
</pallas_src>

<mosaic_0001>
module attributes {stable_mosaic.version = 11 : i64} {
  func.func @_l1_bce_kernel(%arg0: i32, %arg1: memref<2x4x128xf32, #tpu.memory_space<vmem>>, %arg2: memref<2x4x128xf32, #tpu.memory_space<vmem>>, %arg3: memref<1x1xf32, #tpu.memory_space<smem>>) attributes {dimension_semantics = [#tpu.dimension_semantics<arbitrary>], iteration_bounds = array<i64: 2>, scalar_prefetch = 0 : i64, scratch_operands = 0 : i64, tpu.core_type = #tpu.core_type<tc>, window_params = [{transform_indices = @transform_0, window_bounds = array<i64: 2, 4, 128>}, {transform_indices = @transform_1, window_bounds = array<i64: 2, 4, 128>}, {transform_indices = @transform_2, window_bounds = array<i64: 1, 1>}]} {
    %c0 = arith.constant 0 : index
    %c0_0 = arith.constant 0 : index
    %c0_1 = arith.constant 0 : index
    %0 = vector.load %arg1[%c0, %c0_0, %c0_1] : memref<2x4x128xf32, #tpu.memory_space<vmem>>, vector<2x4x128xf32>
    %c0_2 = arith.constant 0 : index
    %c0_3 = arith.constant 0 : index
    %c0_4 = arith.constant 0 : index
    %1 = vector.load %arg2[%c0_2, %c0_3, %c0_4] : memref<2x4x128xf32, #tpu.memory_space<vmem>>, vector<2x4x128xf32>
    %2 = tpu.iota {dimensions = array<i32: 1>} : vector<2x4x128xi32>
    %3 = tpu.iota {dimensions = array<i32: 2>} : vector<2x4x128xi32>
    %c128_i32 = arith.constant 128 : i32
    %4 = arith.muli %arg0, %c128_i32 : i32
    %5 = vector.broadcast %4 : i32 to vector<2x4x128xi32>
    %6 = arith.addi %3, %5 : vector<2x4x128xi32>
    %c256_i32 = arith.constant 256 : i32
    %7 = vector.broadcast %c256_i32 : i32 to vector<2x4x128xi32>
    %8 = arith.cmpi slt, %6, %7 : vector<2x4x128xi32>
    %cst = arith.constant 0.000000e+00 : f32
    %9 = vector.broadcast %cst : f32 to vector<2x4x128xf32>
    %10 = arith.maximumf %0, %9 : vector<2x4x128xf32>
    %11 = arith.mulf %0, %1 : vector<2x4x128xf32>
    %12 = arith.subf %10, %11 : vector<2x4x128xf32>
    %13 = math.absf %0 : vector<2x4x128xf32>
    %cst_5 = arith.constant 0.000000e+00 : f32
    %14 = vector.broadcast %cst_5 : f32 to vector<2x4x128xf32>
    %15 = arith.subf %14, %13 : vector<2x4x128xf32>
    %16 = math.exp %15 : vector<2x4x128xf32>
    %17 = math.log1p %16 : vector<2x4x128xf32>
    %18 = arith.addf %12, %17 : vector<2x4x128xf32>
    %19 = arith.subf %0, %1 : vector<2x4x128xf32>
    %20 = math.absf %19 : vector<2x4x128xf32>
    %c0_i32 = arith.constant 0 : i32
    %21 = vector.broadcast %c0_i32 : i32 to vector<2x4x128xi32>
    %22 = arith.cmpi eq, %2, %21 : vector<2x4x128xi32>
    %cst_6 = arith.constant 2.000000e+02 : f32
    %cst_7 = arith.constant 1.600000e+01 : f32
    %23 = vector.broadcast %cst_6 : f32 to vector<2x4x128xf32>
    %24 = vector.broadcast %cst_7 : f32 to vector<2x4x128xf32>
    %25 = arith.select %22, %23, %24 : vector<2x4x128xi1>, vector<2x4x128xf32>
    %cst_8 = arith.constant 0.001953125 : f32
    %26 = vector.broadcast %cst_8 : f32 to vector<2x4x128xf32>
    %27 = arith.mulf %25, %26 : vector<2x4x128xf32>
    %c2_i32 = arith.constant 2 : i32
    %28 = vector.broadcast %c2_i32 : i32 to vector<2x4x128xi32>
    %29 = arith.cmpi slt, %2, %28 : vector<2x4x128xi32>
    %30 = arith.mulf %27, %18 : vector<2x4x128xf32>
    %31 = arith.select %29, %30, %20 : vector<2x4x128xi1>, vector<2x4x128xf32>
    %cst_9 = arith.constant 0.000000e+00 : f32
    %32 = vector.broadcast %cst_9 : f32 to vector<2x4x128xf32>
    %33 = arith.select %8, %31, %32 : vector<2x4x128xi1>, vector<2x4x128xf32>
    %34 = vector.shape_cast %33 : vector<2x4x128xf32> to vector<1x2x4x128xf32>
    %cst_10 = arith.constant dense<0.000000e+00> : vector<1xf32>
    %35 = vector.multi_reduction <add>, %34, %cst_10 [1, 2, 3] : vector<1x2x4x128xf32> to vector<1xf32>
    %36 = vector.shape_cast %35 : vector<1xf32> to vector<1x1x1x1xf32>
    %37 = vector.extract %36[0, 0, 0, 0] : f32 from vector<1x1x1x1xf32>
    %c0_i32_11 = arith.constant 0 : i32
    %38 = arith.cmpi eq, %arg0, %c0_i32_11 : i32
    %39 = arith.extui %38 : i1 to i32
    %c0_i32_12 = arith.constant 0 : i32
    %40 = arith.cmpi ne, %39, %c0_i32_12 : i32
    scf.if %40 {
      %cst_17 = arith.constant 0.000000e+00 : f32
      %c0_18 = arith.constant 0 : index
      %c0_19 = arith.constant 0 : index
      %44 = memref.load %arg3[%c0_18, %c0_19] : memref<1x1xf32, #tpu.memory_space<smem>>
      memref.store %cst_17, %arg3[%c0_18, %c0_19] : memref<1x1xf32, #tpu.memory_space<smem>>
    } else {
    }
    %c0_13 = arith.constant 0 : index
    %c0_14 = arith.constant 0 : index
    %41 = memref.load %arg3[%c0_13, %c0_14] : memref<1x1xf32, #tpu.memory_space<smem>>
    %42 = arith.addf %41, %37 : f32
    %c0_15 = arith.constant 0 : index
    %c0_16 = arith.constant 0 : index
    %43 = memref.load %arg3[%c0_15, %c0_16] : memref<1x1xf32, #tpu.memory_space<smem>>
    memref.store %42, %arg3[%c0_15, %c0_16] : memref<1x1xf32, #tpu.memory_space<smem>>
    return
  }
  func.func @transform_0(%arg0: i32) -> (i32, i32, i32) {
    %c0_i32 = arith.constant 0 : i32
    %c0_i32_0 = arith.constant 0 : i32
    %c0_i32_1 = arith.constant 0 : i32
    return %c0_i32, %c0_i32_0, %arg0 : i32, i32, i32
  }
  func.func @transform_1(%arg0: i32) -> (i32, i32, i32) {
    %c0_i32 = arith.constant 0 : i32
    %c0_i32_0 = arith.constant 0 : i32
    %c0_i32_1 = arith.constant 0 : i32
    return %c0_i32, %c0_i32_0, %arg0 : i32, i32, i32
  }
  func.func @transform_2(%arg0: i32) -> (i32, i32) {
    %c0_i32 = arith.constant 0 : i32
    %c0_i32_0 = arith.constant 0 : i32
    %c0_i32_1 = arith.constant 0 : i32
    return %c0_i32, %c0_i32_0 : i32, i32
  }
}

</mosaic_0001>

<llo_original>
// kernel: tpu_custom_call.1
$region0: #{tpu_custom_call.1}
  #allocation0 [shape = 'u32[]', space=smem, size = 0x4, offset = 0x4, fixed_abs, tag = 'smem constant byte address 0x4 - core index']
  #allocation1 [shape = 'u32[144,128]{1,0:T(1,128)}', space=vmem, size = 0x12000, scoped, tag = 'internal scratch']
  %s0 = inlined_call_operand.hbm [shape: f32[2,4,256], index: 0, kind: input, shape index: {}]
  %s1 = inlined_call_operand.hbm [shape: f32[2,4,256], index: 1, kind: input, shape index: {}]
  %s2 = inlined_call_operand.hbm [shape: f32[1,1], index: 2, kind: output, shape index: {}]
  %s3 = sld [smem:[#allocation0]]
  $region53: #{tpu_custom_call.1} parent=0
    _
  %s5 = ssub.s32 1, %s3
  %s6 = scalar_select 0, %s5, %s3
  $region1: #{tpu_custom_call.1} parent=0
    #allocation2 [shape = 'u8[8192]{0}', space=vmem, size = 0x2000, scoped, tag = 'input window, operand 0']
    #allocation3 [shape = 's32[2]{0}', space=sflag, size = 0x8, scoped, tag = 'scoped memory for tpu_custom_call.1']
    #allocation4 [shape = 's32[2]{0}', space=sflag, size = 0x8, scoped, tag = 'scoped memory for tpu_custom_call.1']
    #allocation5 [shape = 'u8[8192]{0}', space=vmem, size = 0x2000, scoped, tag = 'input window, operand 1']
    #allocation6 [shape = 's32[2]{0}', space=sflag, size = 0x8, scoped, tag = 'scoped memory for tpu_custom_call.1']
    #allocation7 [shape = 'u8[512]{0}', space=smem, size = 0x200, scoped, tag = 'output window, operand 0, single buffered']
    %7 = vsyncpa [#allocation3], 0
    %s8 = scalar_lea.sflag [#allocation3], 1
    %9 = vsyncpa %s8, 0
    %10 = vsyncpa [#allocation6], 0
    %s11 = scalar_lea.sflag [#allocation6], 1
    %12 = vsyncpa %s11, 0
    %13 = vsyncpa [#allocation4], 0
    loop: start=0, step=1, limit=4
    $region2: #{tpu_custom_call.1} parent=1 // loop_pre_header
      _
    $region3: #{tpu_custom_call.1} parent=1 // loop_header
      %s15 = sphi 0, %s19
      %p16 = scmp.ge.s32.totalorder %s15, 4
      %s25 = sphi 0, %s27
      %s28 = sphi 0, %s25
      %s29 = sphi 0, %s28
      %s45 = sphi 0, %s29
      %s51 = sphi 0, %s53
      %s54 = sphi 0, %s51
      %s55 = sphi 0, %s54
      %s71 = sphi 0, %s55
      %s75 = sphi 0, %s75
      %s77 = sphi 0, %s75
      %s78 = sphi 0, %s77
      %s92 = sphi 0, %s78
    $region4: #{tpu_custom_call.1} parent=1 // loop_header_branch
      %18 = sbr.rel (%p16) target = $region8
    $region5: #{tpu_custom_call.1} parent=1 // loop_body
      %s20 = ssub.s32 %s15, 1
      %s21 = ssub.s32 %s15, 2
      %s22 = sadd.s32 %s15, 1
      %s23 = ssub.s32 %s15, %s22
      %p24 = scmp.eq.s32.totalorder %s23, 0
      %s26 = sadd.s32 %s25, 1
      %s27 = scalar_select %p24, %s25, %s26
      %p30 = pneg %p24
      %p31 = scmp.eq.s32.totalorder %s15, 1
      %p32 = por %p30, %p31
      %p33 = scmp.ne.s32.totalorder %s25, %s28
      %p34 = scmp.eq.s32.totalorder %s15, 0
      %p35 = por %p33, %p34
      %p36 = scmp.ne.s32.totalorder %s25, %s28
      %p37 = scmp.eq.s32.totalorder %s20, 1
      %p38 = por %p36, %p37
      %p39 = scmp.ne.s32.totalorder %s28, %s29
      %p40 = scmp.eq.s32.totalorder %s20, 0
      %p41 = por %p39, %p40
      %p42 = scmp.ne.s32.totalorder %s28, %s29
      %p43 = scmp.eq.s32.totalorder %s21, 1
      %p44 = por %p42, %p43
      %p46 = scmp.ne.s32.totalorder %s29, %s45
      %p47 = scmp.eq.s32.totalorder %s21, 0
      %p48 = por %p46, %p47
      %s49 = ssub.s32 %s15, %s22
      %p50 = scmp.eq.s32.totalorder %s49, 0
      %s52 = sadd.s32 %s51, 1
      %s53 = scalar_select %p50, %s51, %s52
      %p56 = pneg %p50
      %p57 = scmp.eq.s32.totalorder %s15, 1
      %p58 = por %p56, %p57
      %p59 = scmp.ne.s32.totalorder %s51, %s54
      %p60 = scmp.eq.s32.totalorder %s15, 0
      %p61 = por %p59, %p60
      %p62 = scmp.ne.s32.totalorder %s51, %s54
      %p63 = scmp.eq.s32.totalorder %s20, 1
      %p64 = por %p62, %p63
      %p65 = scmp.ne.s32.totalorder %s54, %s55
      %p66 = scmp.eq.s32.totalorder %s20, 0
      %p67 = por %p65, %p66
      %p68 = scmp.ne.s32.totalorder %s54, %s55
      %p69 = scmp.eq.s32.totalorder %s21, 1
      %p70 = por %p68, %p69
      %p72 = scmp.ne.s32.totalorder %s55, %s71
      %p73 = scmp.eq.s32.totalorder %s21, 0
      %p74 = por %p72, %p73
      %s76 = sadd.s32 %s75, 1
      %p79 = scmp.eq.s32.totalorder %s15, 1
      %p80 = scmp.ne.s32.totalorder %s75, %s77
      %p81 = scmp.eq.s32.totalorder %s15, 0
      %p82 = por %p80, %p81
      %p83 = scmp.ne.s32.totalorder %s75, %s77
      %p84 = scmp.eq.s32.totalorder %s20, 1
      %p85 = por %p83, %p84
      %p86 = scmp.ne.s32.totalorder %s77, %s78
      %p87 = scmp.eq.s32.totalorder %s20, 0
      %p88 = por %p86, %p87
      %p89 = scmp.ne.s32.totalorder %s77, %s78
      %p90 = scmp.eq.s32.totalorder %s21, 1
      %p91 = por %p89, %p90
      %p93 = scmp.ne.s32.totalorder %s78, %s92
      %p94 = scmp.eq.s32.totalorder %s21, 0
      %p95 = por %p93, %p94
      %p96 = scmp.le.s32.totalorder 1, %s15
      %p97 = scmp.lt.s32.totalorder %s15, 3
      %p98 = pnand %p96, %p97
      %p99 = pneg %p98
      // Predicated region
      $region9: #{tpu_custom_call.1} parent=5 // pred_check
        _
      $region10: #{tpu_custom_call.1} parent=5 // pred_check_branch
        %101 = sbr.rel (%p98) target = $region12
      $region11: #{tpu_custom_call.1} parent=5 // pred_region
        %s102 = ssub.s32 %s15, 1
      $region12: #{tpu_custom_call.1} parent=5 // pred_fallthru
        _
      %p103 = scmp.lt.s32.totalorder %s15, 2
      // Predicated region
      $region13: #{tpu_custom_call.1} parent=5 // pred_check
        %p104 = pneg %p103
      $region14: #{tpu_custom_call.1} parent=5 // pred_check_branch
        %106 = sbr.rel (%p104) target = $region16
      $region15: #{tpu_custom_call.1} parent=5 // pred_region
        // Predicated region
        $region17: #{tpu_custom_call.1} parent=15 // pred_check
          %p107 = pneg %p35
        $region18: #{tpu_custom_call.1} parent=15 // pred_check_branch
          %109 = sbr.rel (%p107) target = $region20
        $region19: #{tpu_custom_call.1} parent=15 // pred_region
          %s110 = sand.u32 %s25, 1
          %s111 = scalar_lea.sflag [#allocation3], %s110
          %s112 = sand.u32 %s25, 1
          %s113 = smul.addr %s112, 8
          %s114 = scalar_lea.vmem [#allocation2], %s113
          %s116 = ssub.s32 128, 128
          %117 = vsyncadd %s111, %s116
          %s118 = smul.addr %s15, 64
          %s119 = scalar_lea.hbm %s0, %s118
          %s120 = sshll.u32 %s114, 4
          %s121 = int_to_ptr.vmem [resolvable:$true] %s120
          %126 = dma.hbm_to_vmem [thread:$0]  %s119, 128, %s121, %s111, 128, 64, 4
        $region20: #{tpu_custom_call.1} parent=15 // pred_fallthru
          _
        // Predicated region
        $region21: #{tpu_custom_call.1} parent=15 // pred_check
          %p127 = pneg %p61
        $region22: #{tpu_custom_call.1} parent=15 // pred_check_branch
          %129 = sbr.rel (%p127) target = $region24
        $region23: #{tpu_custom_call.1} parent=15 // pred_region
          %s130 = sand.u32 %s51, 1
          %s131 = scalar_lea.sflag [#allocation6], %s130
          %s132 = sand.u32 %s51, 1
          %s133 = smul.addr %s132, 8
          %s134 = scalar_lea.vmem [#allocation5], %s133
          %s136 = ssub.s32 128, 128
          %137 = vsyncadd %s131, %s136
          %s138 = smul.addr %s15, 64
          %s139 = scalar_lea.hbm %s1, %s138
          %s140 = sshll.u32 %s134, 4
          %s141 = int_to_ptr.vmem [resolvable:$true] %s140
          %146 = dma.hbm_to_vmem [thread:$0]  %s139, 128, %s141, %s131, 128, 64, 4
        $region24: #{tpu_custom_call.1} parent=15 // pred_fallthru
          _
      $region16: #{tpu_custom_call.1} parent=5 // pred_fallthru
        _
      %p147 = scmp.le.s32.totalorder 1, %s15
      %p148 = scmp.lt.s32.totalorder %s15, 3
      %p149 = pnand %p147, %p148
      %p150 = pneg %p149
      // Predicated region
      $region25: #{tpu_custom_call.1} parent=5 // pred_check
        _
      $region26: #{tpu_custom_call.1} parent=5 // pred_check_branch
        %152 = sbr.rel (%p149) target = $region28
      $region27: #{tpu_custom_call.1} parent=5 // pred_region
        %s153 = ssub.s32 %s15, 1
        %s154 = sand.u32 %s28, 1
        %s155 = scalar_lea.sflag [#allocation3], %s154
        %s156 = sand.u32 %s28, 1
        %s157 = smul.addr %s156, 8
        %s158 = scalar_lea.vmem [#allocation2], %s157
        // Predicated region
        $region29: #{tpu_custom_call.1} parent=27 // pred_check
          %p159 = pneg %p41
        $region30: #{tpu_custom_call.1} parent=27 // pred_check_branch
          %161 = sbr.rel (%p159) target = $region32
        $region31: #{tpu_custom_call.1} parent=27 // pred_region
          %162 = dma.done %s155, 128
        $region32: #{tpu_custom_call.1} parent=27 // pred_fallthru
          _
        %s163 = sand.u32 %s54, 1
        %s164 = scalar_lea.sflag [#allocation6], %s163
        %s165 = sand.u32 %s54, 1
        %s166 = smul.addr %s165, 8
        %s167 = scalar_lea.vmem [#allocation5], %s166
        // Predicated region
        $region33: #{tpu_custom_call.1} parent=27 // pred_check
          %p168 = pneg %p67
        $region34: #{tpu_custom_call.1} parent=27 // pred_check_branch
          %170 = sbr.rel (%p168) target = $region36
        $region35: #{tpu_custom_call.1} parent=27 // pred_region
          %171 = dma.done %s164, 128
        $region36: #{tpu_custom_call.1} parent=27 // pred_fallthru
          _
        %s172 = sand.u32 %s28, 1
        %s173 = scalar_lea.sflag [#allocation3], %s172
        %s174 = sand.u32 %s28, 1
        %s175 = smul.addr %s174, 8
        %s176 = scalar_lea.vmem [#allocation2], %s175
        %p177 = pneg %p41
        %p178 = pneg %p38
        %s179 = sand.u32 %s54, 1
        %s180 = scalar_lea.sflag [#allocation6], %s179
        %s181 = sand.u32 %s54, 1
        %s182 = smul.addr %s181, 8
        %s183 = scalar_lea.vmem [#allocation5], %s182
        %p184 = pneg %p67
        %p185 = pneg %p64
        %p186 = pneg %p88
        %p187 = pneg %p85
        %v188 = vld [vmem:[%s158] sm:$0xf]
        %v189 = vld [vmem:[%s158 + $0x4] sm:$0xf]
        %v190 = vld [vmem:[%s167] sm:$0xf]
        %v191 = vld [vmem:[%s167 + $0x4] sm:$0xf]
        %v192 = vlaneseq
        %v193 = vshrl.u32 %v192, 7
        %v194 = vlaneseq
        %v195 = vand.u32 %v194, 127
        %s196 = smul.u32 %s20, 128
        %v197 = vstv %s196
        %v198 = vadd.s32 %v195, %v197
        %vm199 = vcmp.lt.s32.totalorder %v198, 256
        %v200 = vmax.f32 %v188, 0.0
        %v201 = vmax.f32 %v189, 0.0
        %v202 = vmul.f32 %v188, %v190
        %v203 = vmul.f32 %v189, %v191
        %v204 = vsub.f32 %v200, %v202
        %v205 = vsub.f32 %v201, %v203
        %v206 = vand.u32 2147483647, %v188
        %v207 = vand.u32 2147483647, %v189
        %v208 = vsub.f32 0.0, %v206
        %v209 = vsub.f32 0.0, %v207
        %v210 = vmul.f32 %v208, 1.442695
        %v211 = vpow.pop %v210
        %v212 = vmul.f32 %v209, 1.442695
        %v213 = vpow.pop %v212
        %v214 = vadd.f32 %v211, 1.0
        %v215 = vlog2.pop %v214
        %v216 = vmul.f32 %v215, 0.6931472
        %v217 = vmul.f32 -0.5, %v211
        %v218 = vadd.f32 %v217, 1.0
        %v219 = vmul.f32 %v218, %v211
        %v220 = vand.u32 2147483647, %v211
        %vm221 = vcmp.lt.f32.partialorder %v220, 0.0004427343
        %v222 = vsel %vm221, %v219, %v216
        %v223 = vadd.f32 %v213, 1.0
        %v224 = vlog2.pop %v223
        %v225 = vmul.f32 %v224, 0.6931472
        %v226 = vmul.f32 -0.5, %v213
        %v227 = vadd.f32 %v226, 1.0
        %v228 = vmul.f32 %v227, %v213
        %v229 = vand.u32 2147483647, %v213
        %vm230 = vcmp.lt.f32.partialorder %v229, 0.0004427343
        %v231 = vsel %vm230, %v228, %v225
        %v232 = vadd.f32 %v204, %v222
        %v233 = vadd.f32 %v205, %v231
        %v234 = vsub.f32 %v188, %v190
        %v235 = vsub.f32 %v189, %v191
        %v236 = vand.u32 2147483647, %v234
        %v237 = vand.u32 2147483647, %v235
        %vm238 = vcmp.eq.s32.totalorder %v193, 0
        %v239 = vsel %vm238, 200.0, 16.0
        %v240 = vmul.f32 %v239, 0.001953125
        %vm241 = vcmp.lt.s32.totalorder %v193, 2
        %v242 = vmul.f32 %v240, %v232
        %v243 = vmul.f32 %v240, %v233
        %v244 = vsel %vm241, %v242, %v236
        %v245 = vsel %vm241, %v243, %v237
        %v246 = vsel %vm199, %v244, 0.0
        %v247 = vsel %vm199, %v245, 0.0
        %vm248 = vcmask 1043456
        %v249 = vsel %vm248, %v246, 0.0
        %v250 = vsel %vm248, %v247, 0.0
        %v251 = vadd.f32 %v249, %v250
        %252 = vadd.xlane.f32.xlu0 %v251
        %v253 = vpop.xlane.xlu0 %252
        %v254 = vrot.slane %v253, 4
        %v255 = vadd.f32 %v253, %v254
        %v256 = vrot.slane %v255, 2
        %v257 = vadd.f32 %v255, %v256
        %v258 = vrot.slane %v257, 1
        %v259 = vadd.f32 %v257, %v258
        %s260 = vtos %v259
        %p261 = scmp.eq.s32.totalorder %s20, 0
        // Predicated region
        $region37: #{tpu_custom_call.1} parent=27 // pred_check
          %p262 = pneg %p261
        $region38: #{tpu_custom_call.1} parent=27 // pred_check_branch
          %264 = sbr.rel (%p262) target = $region40
        $region39: #{tpu_custom_call.1} parent=27 // pred_region
          %s265 = scalar_lea.smem [#allocation7], 0
          %266 = sst [smem:[%s265]] 0.0
        $region40: #{tpu_custom_call.1} parent=27 // pred_fallthru
          _
        %s267 = sld [smem:[#allocation7]]
        %s268 = sadd.f32 %s267, %s260
        %s269 = scalar_lea.smem [#allocation7], 0
        %270 = sst [smem:[%s269]] %s268
        // Predicated region
        $region41: #{tpu_custom_call.1} parent=27 // pred_check
          %p271 = pneg %p85
        $region42: #{tpu_custom_call.1} parent=27 // pred_check_branch
          %273 = sbr.rel (%p271) target = $region44
        $region43: #{tpu_custom_call.1} parent=27 // pred_region
          %s275 = ssub.s32 16, 16
          %276 = vsyncadd [#allocation4], %s275
          %279 = dma.smem_to_hbm [#allocation7], 16, %s2, [#allocation4]
        $region44: #{tpu_custom_call.1} parent=27 // pred_fallthru
          _
        // Predicated region
        $region45: #{tpu_custom_call.1} parent=27 // pred_check
          %p280 = pneg %p85
        $region46: #{tpu_custom_call.1} parent=27 // pred_check_branch
          %282 = sbr.rel (%p280) target = $region48
        $region47: #{tpu_custom_call.1} parent=27 // pred_region
          %283 = dma.done [#allocation4], 16
        $region48: #{tpu_custom_call.1} parent=27 // pred_fallthru
          _
        %284 = sfence
      $region28: #{tpu_custom_call.1} parent=5 // pred_fallthru
        _
      %p285 = scmp.le.s32.totalorder 2, %s15
      // Predicated region
      $region49: #{tpu_custom_call.1} parent=5 // pred_check
        %p286 = pneg %p285
      $region50: #{tpu_custom_call.1} parent=5 // pred_check_branch
        %288 = sbr.rel (%p286) target = $region52
      $region51: #{tpu_custom_call.1} parent=5 // pred_region
        %s289 = ssub.s32 %s15, 2
      $region52: #{tpu_custom_call.1} parent=5 // pred_fallthru
        _
    $region6: #{tpu_custom_call.1} parent=1 // loop_footer
      %s19 = sadd.s32 1, %s15
    $region7: #{tpu_custom_call.1} parent=1 // loop_footer_branch
      %14 = sbr.rel target = $region3
    $region8: #{tpu_custom_call.1} parent=1 // loop_exit
      _
    %290 = vsyncpa [#allocation3], 1
    %s291 = scalar_lea.sflag [#allocation3], 1
    %292 = vsyncpa %s291, 1
    %293 = vsyncpa [#allocation6], 1
    %s294 = scalar_lea.sflag [#allocation6], 1
    %295 = vsyncpa %s294, 1
    %296 = vsyncpa [#allocation4], 1
    %s297 = scalar_lea.sflag [#allocation4], 1
    %298 = vsyncpa %s297, 1

</llo_original>
